<compile_context>
chip_gen: v7x
topology: tpu7x:2x2x1
jax: 0.10.0
libtpu: 0.0.40
codegen_flags: <defaults>
</compile_context>

<pallas_src>
import numpy as np
import jax
import jax.numpy as jnp
from jax.experimental import pallas as pl
from jax.experimental.pallas import tpu as pltpu

BN_EPS = 1e-3
# bf16 matmul operands (native MXU dtype on all current TPUs); f32 accumulate
# and f32 bias/ReLU/residual epilogue (v5e VPU has no bf16).
COMPUTE_DTYPE = jnp.bfloat16


def _round_up(x, m):
    return ((x + m - 1) // m) * m


def _mxu_row_tile(default=128):
    """MXU-native M tile: 128 on v5e (4x128^2), 256 on v6e/v7x (2x256^2)."""
    try:
        info = pltpu.get_tpu_info()
        ver = str(getattr(info, "chip_version", "")).lower()
        if "5" in ver:
            return 128
        if "6" in ver or "7" in ver:
            return 256
    except Exception:
        pass
    return default


def _pick_row_tile(n, max_tile):
    # Biggest row tile that fits; multiple of 16 so bf16 sublane packing is
    # clean.  Partial edge blocks are masked by Pallas (no external padding).
    return int(min(max_tile, _round_up(max(n, 1), 16)))


# ----------------------------- Pallas kernels ------------------------------ #

def _linear_bn_relu_res_kernel(x_ref, w_ref, b_ref, res_ref, o_ref):
    # o = residual + relu(x @ W_folded + bias)     (Conv1d(bn=True) + skip)
    y = jnp.dot(x_ref[...], w_ref[...], preferred_element_type=jnp.float32)
    o_ref[...] = res_ref[...] + jnp.maximum(y + b_ref[...], 0.0)


def linear_bn_relu_res(x, w, bias, residual, max_tile=512):
    n, cin = x.shape
    cout = w.shape[1]
    tile_n = _pick_row_tile(n, max_tile)
    grid = pl.cdiv(n, tile_n)
    return pl.pallas_call(
        _linear_bn_relu_res_kernel,
        out_shape=jax.ShapeDtypeStruct((n, cout), jnp.float32),
        grid=(grid,),
        in_specs=[
            pl.BlockSpec((tile_n, cin), lambda i: (i, 0)),
            # constant-index weight/bias blocks: not re-DMA'd across steps
            pl.BlockSpec((cin, cout), lambda i: (0, 0)),
            pl.BlockSpec((1, cout), lambda i: (0, 0)),
            pl.BlockSpec((tile_n, cout), lambda i: (i, 0)),
        ],
        out_specs=pl.BlockSpec((tile_n, cout), lambda i: (i, 0)),
        compiler_params=pltpu.CompilerParams(dimension_semantics=("parallel",)),
    )(x.astype(w.dtype), w, bias.reshape(1, -1), residual)


def _bin_shuffle_kernel(x_ref, w1_ref, b1_ref, w2_ref, b2_ref, o_ref):
    # relu(relu(x @ W1_folded + b1) @ W2_folded + b2)  — fused bin_shuffle MLP
    h = jnp.dot(x_ref[...], w1_ref[...], preferred_element_type=jnp.float32)
    h = jnp.maximum(h + b1_ref[...], 0.0)
    y = jnp.dot(h.astype(w2_ref.dtype), w2_ref[...],
                preferred_element_type=jnp.float32)
    o_ref[...] = jnp.maximum(y + b2_ref[...], 0.0)


def bin_shuffle_pallas(x, w1, b1, w2, b2, max_tile=None):
    n, cin = x.shape
    chid = w1.shape[1]
    cout = w2.shape[1]
    if max_tile is None:
        max_tile = _mxu_row_tile()
    tile_n = _pick_row_tile(n, max_tile)
    grid = pl.cdiv(n, tile_n)
    return pl.pallas_call(
        _bin_shuffle_kernel,
        out_shape=jax.ShapeDtypeStruct((n, cout), jnp.float32),
        grid=(grid,),
        in_specs=[
            pl.BlockSpec((tile_n, cin), lambda i: (i, 0)),
            pl.BlockSpec((cin, chid), lambda i: (0, 0)),
            pl.BlockSpec((1, chid), lambda i: (0, 0)),
            pl.BlockSpec((chid, cout), lambda i: (0, 0)),
            pl.BlockSpec((1, cout), lambda i: (0, 0)),
        ],
        out_specs=pl.BlockSpec((tile_n, cout), lambda i: (i, 0)),
        compiler_params=pltpu.CompilerParams(dimension_semantics=("parallel",)),
    )(x.astype(w1.dtype), w1, b1.reshape(1, -1), w2, b2.reshape(1, -1))


# --------------------------- parameter preparation -------------------------- #

def fold_bn(gamma, beta, rmean, rvar, eps=BN_EPS):
    scale = gamma / jnp.sqrt(rvar + eps)
    bias = beta - rmean * scale
    return scale, bias


def prepare_linear_bn(w, gamma, beta, rmean, rvar, eps=BN_EPS,
                      compute_dtype=COMPUTE_DTYPE):
    """Fold eval-mode BatchNorm into (weight, bias); weight cast to MXU dtype."""
    scale, bias = fold_bn(gamma, beta, rmean, rvar, eps)
    w_folded = (w * scale[None, :]).astype(compute_dtype)
    return w_folded, bias.astype(jnp.float32)


# ------------------------------- forward pass ------------------------------- #

def zconv_forward(sparse_features, points, pillar_merge_coords, params, cfg,
                  use_pallas=True):
    """Zconv.forward, downsample_level == 1 (point_sum_subm branch), eval BN.

    Fully static-shape / jittable: jnp.unique uses static size=, scatter_mean
    is segment_sum with static num_segments, and the occupied-mask gather /
    in-place add is a masked dense add over all pillars.

    Implicit contract (same as the PyTorch module): every row of
    `sparse_features` is a pillar with >= 1 point and rows are sorted by the
    pillar merge coordinate, so sorted-unique pillar coords align 1:1 with
    sparse rows.
    """
    n_points = points.shape[0]
    n_pillars, feat_c = sparse_features.shape
    num_bins = cfg["num_bins"]

    def conv1d_bn_relu_res(x, res):
        if use_pallas:
            return linear_bn_relu_res(x, params["w_conv"], params["b_conv"], res)
        y = jnp.dot(x.astype(params["w_conv"].dtype), params["w_conv"],
                    preferred_element_type=jnp.float32)
        return res + jnp.maximum(y + params["b_conv"], 0.0)

    def bin_shuffle(x):
        if use_pallas:
            return bin_shuffle_pallas(x, params["w1"], params["b1"],
                                      params["w2"], params["b2"])
        h = jnp.dot(x.astype(params["w1"].dtype), params["w1"],
                    preferred_element_type=jnp.float32)
        h = jnp.maximum(h + params["b1"], 0.0)
        y = jnp.dot(h.astype(params["w2"].dtype), params["w2"],
                    preferred_element_type=jnp.float32)
        return jnp.maximum(y + params["b2"], 0.0)

    # ---- point_sum_subm ----
    order = jnp.argsort(pillar_merge_coords)
    points_sorted = points[order]
    pmc_sorted = pillar_merge_coords[order]
    _, inv = jnp.unique(pmc_sorted, return_inverse=True, size=n_pillars)
    gathered_sparse = sparse_features[inv.ravel()]
    points_feature = conv1d_bn_relu_res(points_sorted[:, 1:], gathered_sparse)
    points_sorted = jnp.concatenate(
        [points_sorted[:, :1], points_sorted[:, 4:]], axis=1)

    # ---- dyn_voxelization (scatter_mean via segment_sum, static sizes) ----
    coords = jnp.floor(
        (points_sorted[:, 1:4] - cfg["pc_range"][:3]) / cfg["voxel_size"]
    ).astype(jnp.int32)
    merge = (points_sorted[:, 0].astype(jnp.int32) * cfg["scale_xyz"]
             + coords[:, 0] * cfg["scale_yz"]
             + coords[:, 1] * cfg["scale_z"]
             + coords[:, 2])
    max_voxels = n_points                       # static upper bound on #voxels
    unq, unq_inv = jnp.unique(merge, return_inverse=True,
                              size=max_voxels, fill_value=-1)
    unq_inv = unq_inv.ravel()
    sums = jax.ops.segment_sum(points_feature, unq_inv, num_segments=max_voxels)
    cnts = jax.ops.segment_sum(jnp.ones((n_points,), jnp.float32), unq_inv,
                               num_segments=max_voxels)
    voxel_valid = unq >= 0                      # padded slots carry fill -1
    voxel_features = sums / jnp.maximum(cnts, 1.0)[:, None]
    unq = unq.astype(jnp.int32)
    voxel_coords = jnp.stack(
        [unq // cfg["scale_xyz"],
         unq % cfg["scale_xyz"] // cfg["scale_yz"],
         unq % cfg["scale_yz"] // cfg["scale_z"],
         unq % cfg["scale_z"]], axis=1)
    voxel_coords = voxel_coords[:, [0, 3, 2, 1]]   # -> (batch, z, y, x)

    # ---- binning (fixed n_pillars bins, aligned with sparse rows) ----
    v_feat_coords = (voxel_coords[:, 0] * cfg["scale_xy"]
                     + voxel_coords[:, 3] * cfg["scale_y"]
                     + voxel_coords[:, 2])
    big = 2 ** 30                               # sorts after every real coord
    v_feat_coords = jnp.where(voxel_valid, v_feat_coords, big)
    _, unq_inv2, unq_cnt = jnp.unique(
        v_feat_coords, return_inverse=True, return_counts=True,
        size=n_pillars + 1, fill_value=big)
    unq_inv2 = unq_inv2.ravel()

    # src buffer sized to a sublane-friendly multiple of 16; the extra rows
    # (sentinel group + rounding) stay zero and are masked out below.
    n_rows = _round_up(n_pillars + 1, 16)
    src = jnp.zeros((n_rows, num_bins, feat_c), jnp.float32)
    src = src.at[unq_inv2, voxel_coords[:, 1]].set(voxel_features)
    occupied = unq_cnt[:n_pillars] >= 2

    # bin_shuffle over all pillar rows (static shape); unoccupied rows are
    # computed but masked out of the residual add (same result as the
    # occupied_mask gather in the original, but jittable).
    src = bin_shuffle(src.reshape(n_rows, num_bins * feat_c))[:n_pillars]
    return sparse_features + jnp.where(occupied[:, None], src, 0.0)


# --------------------------------- main ------------------------------------ #

if __name__ == "__main__":
    # ---- config (small, consistent with Zconv.__init__ for encoder level 1) --
    grid_size = np.array([16, 16, 8])       # (x, y, z); z bins == num_bins
    num_bins = 8
    output_channel = 32                     # out_channel (level 1: * 2**0)
    feat_channel = 32                       # voxel feature dim == output_channel
    bin_in = feat_channel * num_bins        # 256
    bin_hid = bin_in // 2                   # 128

    cfg = dict(
        num_bins=num_bins,
        voxel_size=jnp.array([1.0, 1.0, 1.0], jnp.float32),
        pc_range=jnp.array([0.0, 0.0, 0.0, 16.0, 16.0, 8.0], jnp.float32),
        scale_xy=int(grid_size[0] * grid_size[1]),
        scale_y=int(grid_size[1]),
        scale_xyz=int(grid_size[0] * grid_size[1] * grid_size[2]),
        scale_yz=int(grid_size[1] * grid_size[2]),
        scale_z=int(grid_size[2]),
    )

    # ---- deterministic parameters (BN folded + bf16 weights, once) ----
    keys = jax.random.split(jax.random.PRNGKey(0), 16)
    w_conv_raw = jax.random.normal(keys[0], (8, output_channel), jnp.float32) * 0.2
    w_conv, b_conv = prepare_linear_bn(
        w_conv_raw,
        1.0 + 0.1 * jax.random.normal(keys[1], (output_channel,)),
        0.1 * jax.random.normal(keys[2], (output_channel,)),
        0.1 * jax.random.normal(keys[3], (output_channel,)),
        jax.random.uniform(keys[4], (output_channel,), minval=0.5, maxval=1.5))
    w1_raw = jax.random.normal(keys[5], (bin_in, bin_hid), jnp.float32) * 0.05
    w1, b1 = prepare_linear_bn(
        w1_raw,
        1.0 + 0.1 * jax.random.normal(keys[6], (bin_hid,)),
        0.1 * jax.random.normal(keys[7], (bin_hid,)),
        0.1 * jax.random.normal(keys[8], (bin_hid,)),
        jax.random.uniform(keys[9], (bin_hid,), minval=0.5, maxval=1.5))
    w2_raw = jax.random.normal(keys[10], (bin_hid, output_channel), jnp.float32) * 0.1
    w2, b2 = prepare_linear_bn(
        w2_raw,
        1.0 + 0.1 * jax.random.normal(keys[11], (output_channel,)),
        0.1 * jax.random.normal(keys[12], (output_channel,)),
        0.1 * jax.random.normal(keys[13], (output_channel,)),
        jax.random.uniform(keys[14], (output_channel,), minval=0.5, maxval=1.5))
    params = dict(w_conv=w_conv, b_conv=b_conv, w1=w1, b1=b1, w2=w2, b2=b2)

    # ---- deterministic synthetic inputs (every pillar has >=1 point; sparse
    #      rows sorted by pillar merge coord — the module's implicit contract) --
    n_pillars = 12
    n_points = 256
    pil_b = np.array([i // 6 for i in range(n_pillars)], np.int32)
    pil_x = np.array([(i * 3) % 16 for i in range(n_pillars)], np.int32)
    pil_y = np.array([(i * 5) % 16 for i in range(n_pillars)], np.int32)
    pil_merge = pil_b * cfg["scale_xy"] + pil_x * cfg["scale_y"] + pil_y
    order = np.argsort(pil_merge)
    pil_b, pil_x, pil_y, pil_merge = (pil_b[order], pil_x[order],
                                      pil_y[order], pil_merge[order])

    sparse_features = jax.random.normal(
        keys[15], (n_pillars, output_channel), jnp.float32)

    pk = jax.random.split(jax.random.PRNGKey(1), 3)
    pidx = np.arange(n_points) % n_pillars
    zbin = (np.arange(n_points) * 7) % num_bins
    feats_a = jax.random.normal(pk[0], (n_points, 3), jnp.float32)
    feats_b = jax.random.normal(pk[1], (n_points, 2), jnp.float32)
    # point columns: [batch, f1, f2, f3, x, y, z, f7, f8]  (conv sees cols 1:)
    points = jnp.concatenate(
        [jnp.asarray(pil_b[pidx], jnp.float32)[:, None],
         feats_a,
         jnp.asarray(pil_x[pidx], jnp.float32)[:, None] + 0.5,
         jnp.asarray(pil_y[pidx], jnp.float32)[:, None] + 0.5,
         jnp.asarray(zbin, jnp.float32)[:, None] + 0.5,
         feats_b], axis=1)
    pillar_merge_coords = jnp.asarray(pil_merge[pidx], jnp.int32)

    # ---- run (whole forward is jitted end-to-end; cfg is a static closure) --
    fwd_pallas = jax.jit(
        lambda sf, pts, pmc, prm: zconv_forward(sf, pts, pmc, prm, cfg, True))
    fwd_ref = jax.jit(
        lambda sf, pts, pmc, prm: zconv_forward(sf, pts, pmc, prm, cfg, False))

    out = jax.block_until_ready(
        fwd_pallas(sparse_features, points, pillar_merge_coords, params))
    ref = jax.block_until_ready(
        fwd_ref(sparse_features, points, pillar_merge_coords, params))

    np.testing.assert_allclose(np.asarray(out), np.asarray(ref),
                               rtol=1e-3, atol=1e-3)
    print("KERNEL_OK")
</pallas_src>

<mosaic_0001>
module attributes {stable_mosaic.version = 11 : i64} {
  func.func private @main(%arg0: i32) attributes {dimension_semantics = [#tpu.dimension_semantics<core_parallel>], iteration_bounds = array<i64: 2>, tpu.core_type = #tpu.core_type<sc_scalar_subcore>, window_params = []} {
    return
  }
}

module attributes {stable_mosaic.version = 11 : i64} {
  func.func private @main(%arg0: i32) attributes {dimension_semantics = [#tpu.dimension_semantics<core_parallel>], iteration_bounds = array<i64: 2>, tpu.core_type = #tpu.core_type<sc_scalar_subcore>, window_params = []} {
    return
  }
}

module attributes {stable_mosaic.version = 11 : i64} {
  func.func @_linear_bn_relu_res_kernel(%arg0: i32, %arg1: memref<256x8xbf16, #tpu.memory_space<vmem>>, %arg2: memref<8x32xbf16, #tpu.memory_space<vmem>>, %arg3: memref<1x32xf32, #tpu.memory_space<vmem>>, %arg4: memref<256x32xf32, #tpu.memory_space<vmem>>, %arg5: memref<256x32xf32, #tpu.memory_space<vmem>>) attributes {dimension_semantics = [#tpu.dimension_semantics<parallel>], iteration_bounds = array<i64: 1>, scalar_prefetch = 0 : i64, scratch_operands = 0 : i64, tpu.core_type = #tpu.core_type<tc>, window_params = [{transform_indices = @transform_0, window_bounds = array<i64: 256, 8>}, {pipeline_mode = #tpu.pipeline_mode<synchronous>, transform_indices = @transform_1, window_bounds = array<i64: 8, 32>}, {pipeline_mode = #tpu.pipeline_mode<synchronous>, transform_indices = @transform_2, window_bounds = array<i64: 1, 32>}, {transform_indices = @transform_3, window_bounds = array<i64: 256, 32>}, {transform_indices = @transform_4, window_bounds = array<i64: 256, 32>}]} {
    %c0 = arith.constant 0 : index
    %c0_0 = arith.constant 0 : index
    %0 = vector.load %arg1[%c0, %c0_0] : memref<256x8xbf16, #tpu.memory_space<vmem>>, vector<256x8xbf16>
    %c0_1 = arith.constant 0 : index
    %c0_2 = arith.constant 0 : index
    %1 = vector.load %arg2[%c0_1, %c0_2] : memref<8x32xbf16, #tpu.memory_space<vmem>>, vector<8x32xbf16>
    %cst = arith.constant dense<0.000000e+00> : vector<256x32xf32>
    %2 = tpu.matmul %0, %1, %cst {dimension_numbers = #tpu.dot_dimension_numbers<[1], [0], [0], [1], [0, 0, 1, 1], [], []>} : vector<256x8xbf16>, vector<8x32xbf16>, vector<256x32xf32> -> vector<256x32xf32>
    %c0_3 = arith.constant 0 : index
    %c0_4 = arith.constant 0 : index
    %3 = vector.load %arg4[%c0_3, %c0_4] : memref<256x32xf32, #tpu.memory_space<vmem>>, vector<256x32xf32>
    %c0_5 = arith.constant 0 : index
    %c0_6 = arith.constant 0 : index
    %4 = vector.load %arg3[%c0_5, %c0_6] : memref<1x32xf32, #tpu.memory_space<vmem>>, vector<1x32xf32>
    %5 = vector.broadcast %4 : vector<1x32xf32> to vector<256x32xf32>
    %6 = arith.addf %2, %5 : vector<256x32xf32>
    %cst_7 = arith.constant 0.000000e+00 : f32
    %7 = vector.broadcast %cst_7 : f32 to vector<256x32xf32>
    %8 = arith.maximumf %6, %7 : vector<256x32xf32>
    %9 = arith.addf %3, %8 : vector<256x32xf32>
    %c0_8 = arith.constant 0 : index
    %c0_9 = arith.constant 0 : index
    %10 = vector.load %arg5[%c0_8, %c0_9] : memref<256x32xf32, #tpu.memory_space<vmem>>, vector<256x32xf32>
    tpu.vector_store %arg5[%c0_8, %c0_9], %9 {strides = array<i32>} : memref<256x32xf32, #tpu.memory_space<vmem>>, vector<256x32xf32>,
    return
  }
  func.func @transform_0(%arg0: i32) -> (i32, i32) {
    %c0_i32 = arith.constant 0 : i32
    %c0_i32_0 = arith.constant 0 : i32
    return %arg0, %c0_i32 : i32, i32
  }
  func.func @transform_1(%arg0: i32) -> (i32, i32) {
    %c0_i32 = arith.constant 0 : i32
    %c0_i32_0 = arith.constant 0 : i32
    %c0_i32_1 = arith.constant 0 : i32
    return %c0_i32, %c0_i32_0 : i32, i32
  }
  func.func @transform_2(%arg0: i32) -> (i32, i32) {
    %c0_i32 = arith.constant 0 : i32
    %c0_i32_0 = arith.constant 0 : i32
    %c0_i32_1 = arith.constant 0 : i32
    return %c0_i32, %c0_i32_0 : i32, i32
  }
  func.func @transform_3(%arg0: i32) -> (i32, i32) {
    %c0_i32 = arith.constant 0 : i32
    %c0_i32_0 = arith.constant 0 : i32
    return %arg0, %c0_i32 : i32, i32
  }
  func.func @transform_4(%arg0: i32) -> (i32, i32) {
    %c0_i32 = arith.constant 0 : i32
    %c0_i32_0 = arith.constant 0 : i32
    return %arg0, %c0_i32 : i32, i32
  }
}

module attributes {stable_mosaic.version = 11 : i64} {
  func.func @_bin_shuffle_kernel(%arg0: i32, %arg1: memref<16x256xbf16, #tpu.memory_space<vmem>>, %arg2: memref<256x128xbf16, #tpu.memory_space<vmem>>, %arg3: memref<1x128xf32, #tpu.memory_space<vmem>>, %arg4: memref<128x32xbf16, #tpu.memory_space<vmem>>, %arg5: memref<1x32xf32, #tpu.memory_space<vmem>>, %arg6: memref<16x32xf32, #tpu.memory_space<vmem>>) attributes {dimension_semantics = [#tpu.dimension_semantics<parallel>], iteration_bounds = array<i64: 1>, scalar_prefetch = 0 : i64, scratch_operands = 0 : i64, tpu.core_type = #tpu.core_type<tc>, window_params = [{transform_indices = @transform_0, window_bounds = array<i64: 16, 256>}, {pipeline_mode = #tpu.pipeline_mode<synchronous>, transform_indices = @transform_1, window_bounds = array<i64: 256, 128>}, {pipeline_mode = #tpu.pipeline_mode<synchronous>, transform_indices = @transform_2, window_bounds = array<i64: 1, 128>}, {pipeline_mode = #tpu.pipeline_mode<synchronous>, transform_indices = @transform_3, window_bounds = array<i64: 128, 32>}, {pipeline_mode = #tpu.pipeline_mode<synchronous>, transform_indices = @transform_4, window_bounds = array<i64: 1, 32>}, {transform_indices = @transform_5, window_bounds = array<i64: 16, 32>}]} {
    %c0 = arith.constant 0 : index
    %c0_0 = arith.constant 0 : index
    %0 = vector.load %arg1[%c0, %c0_0] : memref<16x256xbf16, #tpu.memory_space<vmem>>, vector<16x256xbf16>
    %c0_1 = arith.constant 0 : index
    %c0_2 = arith.constant 0 : index
    %1 = vector.load %arg2[%c0_1, %c0_2] : memref<256x128xbf16, #tpu.memory_space<vmem>>, vector<256x128xbf16>
    %cst = arith.constant dense<0.000000e+00> : vector<16x128xf32>
    %2 = tpu.matmul %0, %1, %cst {dimension_numbers = #tpu.dot_dimension_numbers<[1], [0], [0], [1], [0, 0, 1, 1], [], []>} : vector<16x256xbf16>, vector<256x128xbf16>, vector<16x128xf32> -> vector<16x128xf32>
    %c0_3 = arith.constant 0 : index
    %c0_4 = arith.constant 0 : index
    %3 = vector.load %arg3[%c0_3, %c0_4] : memref<1x128xf32, #tpu.memory_space<vmem>>, vector<1x128xf32>
    %4 = vector.broadcast %3 : vector<1x128xf32> to vector<16x128xf32>
    %5 = arith.addf %2, %4 : vector<16x128xf32>
    %cst_5 = arith.constant 0.000000e+00 : f32
    %6 = vector.broadcast %cst_5 : f32 to vector<16x128xf32>
    %7 = arith.maximumf %5, %6 : vector<16x128xf32>
    %8 = arith.truncf %7 : vector<16x128xf32> to vector<16x128xbf16>
    %c0_6 = arith.constant 0 : index
    %c0_7 = arith.constant 0 : index
    %9 = vector.load %arg4[%c0_6, %c0_7] : memref<128x32xbf16, #tpu.memory_space<vmem>>, vector<128x32xbf16>
    %cst_8 = arith.constant dense<0.000000e+00> : vector<16x32xf32>
    %10 = tpu.matmul %8, %9, %cst_8 {dimension_numbers = #tpu.dot_dimension_numbers<[1], [0], [0], [1], [0, 0, 1, 1], [], []>} : vector<16x128xbf16>, vector<128x32xbf16>, vector<16x32xf32> -> vector<16x32xf32>
    %c0_9 = arith.constant 0 : index
    %c0_10 = arith.constant 0 : index
    %11 = vector.load %arg5[%c0_9, %c0_10] : memref<1x32xf32, #tpu.memory_space<vmem>>, vector<1x32xf32>
    %12 = vector.broadcast %11 : vector<1x32xf32> to vector<16x32xf32>
    %13 = arith.addf %10, %12 : vector<16x32xf32>
    %cst_11 = arith.constant 0.000000e+00 : f32
    %14 = vector.broadcast %cst_11 : f32 to vector<16x32xf32>
    %15 = arith.maximumf %13, %14 : vector<16x32xf32>
    %c0_12 = arith.constant 0 : index
    %c0_13 = arith.constant 0 : index
    %16 = vector.load %arg6[%c0_12, %c0_13] : memref<16x32xf32, #tpu.memory_space<vmem>>, vector<16x32xf32>
    tpu.vector_store %arg6[%c0_12, %c0_13], %15 {strides = array<i32>} : memref<16x32xf32, #tpu.memory_space<vmem>>, vector<16x32xf32>,
    return
  }
  func.func @transform_0(%arg0: i32) -> (i32, i32) {
    %c0_i32 = arith.constant 0 : i32
    %c0_i32_0 = arith.constant 0 : i32
    return %arg0, %c0_i32 : i32, i32
  }
  func.func @transform_1(%arg0: i32) -> (i32, i32) {
    %c0_i32 = arith.constant 0 : i32
    %c0_i32_0 = arith.constant 0 : i32
    %c0_i32_1 = arith.constant 0 : i32
    return %c0_i32, %c0_i32_0 : i32, i32
  }
  func.func @transform_2(%arg0: i32) -> (i32, i32) {
    %c0_i32 = arith.constant 0 : i32
    %c0_i32_0 = arith.constant 0 : i32
    %c0_i32_1 = arith.constant 0 : i32
    return %c0_i32, %c0_i32_0 : i32, i32
  }
  func.func @transform_3(%arg0: i32) -> (i32, i32) {
    %c0_i32 = arith.constant 0 : i32
    %c0_i32_0 = arith.constant 0 : i32
    %c0_i32_1 = arith.constant 0 : i32
    return %c0_i32, %c0_i32_0 : i32, i32
  }
  func.func @transform_4(%arg0: i32) -> (i32, i32) {
    %c0_i32 = arith.constant 0 : i32
    %c0_i32_0 = arith.constant 0 : i32
    %c0_i32_1 = arith.constant 0 : i32
    return %c0_i32, %c0_i32_0 : i32, i32
  }
  func.func @transform_5(%arg0: i32) -> (i32, i32) {
    %c0_i32 = arith.constant 0 : i32
    %c0_i32_0 = arith.constant 0 : i32
    return %arg0, %c0_i32 : i32, i32
  }
}

</mosaic_0001>

<llo_original>
// kernel: _lambda_.2
$region0: #{_lambda_.2}
  #allocation0 [shape = 'u32[]', space=smem, size = 0x4, offset = 0x4, fixed_abs, tag = 'smem constant byte address 0x4 - core index']
  #allocation1 [shape = 'u32[144,128]{1,0:T(1,128)}', space=vmem, size = 0x12000, scoped, tag = 'internal scratch']
  %s0 = inlined_call_operand.vmem [shape: bf16[256,8], index: 0, kind: input, shape index: {}]
  %s1 = inlined_call_operand.vmem [shape: bf16[8,32], index: 1, kind: input, shape index: {}]
  %s2 = inlined_call_operand.vmem [shape: f32[1,32], index: 2, kind: input, shape index: {}]
  %s3 = inlined_call_operand.vmem [shape: f32[256,32], index: 3, kind: input, shape index: {}]
  %s4 = inlined_call_operand.vmem [shape: f32[256,32], index: 4, kind: output, shape index: {}]
  %s5 = sld [smem:[#allocation0]]
  $region26: #{_lambda_.2} parent=0
    _
  %s7 = ssub.s32 1, %s5
  %s8 = scalar_select 0, %s7, %s5
  // Predicated region
  $region2: #{_lambda_.2} parent=0 // pred_check
    _
  $region3: #{_lambda_.2} parent=0 // pred_check_branch
    %10 = sbr.rel (0) target = $region5
  $region4: #{_lambda_.2} parent=0 // pred_region
    _
  $region5: #{_lambda_.2} parent=0 // pred_fallthru
    _
  // Predicated region
  $region6: #{_lambda_.2} parent=0 // pred_check
    _
  $region7: #{_lambda_.2} parent=0 // pred_check_branch
    %12 = sbr.rel (0) target = $region9
  $region8: #{_lambda_.2} parent=0 // pred_region
    _
  $region9: #{_lambda_.2} parent=0 // pred_fallthru
    _
  // Predicated region
  $region10: #{_lambda_.2} parent=0 // pred_check
    _
  $region11: #{_lambda_.2} parent=0 // pred_check_branch
    %14 = sbr.rel (0) target = $region13
  $region12: #{_lambda_.2} parent=0 // pred_region
    _
  $region13: #{_lambda_.2} parent=0 // pred_fallthru
    _
  // Predicated region
  $region14: #{_lambda_.2} parent=0 // pred_check
    _
  $region15: #{_lambda_.2} parent=0 // pred_check_branch
    %16 = sbr.rel (0) target = $region17
  $region16: #{_lambda_.2} parent=0 // pred_region
    _
  $region17: #{_lambda_.2} parent=0 // pred_fallthru
    _
  %v18 = vld [vmem:[%s0] sm:$0xf]
  %v19 = vld [vmem:[%s0 + $0x4] sm:$0xf]
  %v20 = vld [vmem:[%s0 + $0x8] sm:$0xf]
  %v21 = vld [vmem:[%s0 + $0xc] sm:$0xf]
  %v22 = vld [vmem:[%s0 + $0x10] sm:$0xf]
  %v23 = vld [vmem:[%s0 + $0x14] sm:$0xf]
  %v24 = vld [vmem:[%s0 + $0x18] sm:$0xf]
  %v25 = vld [vmem:[%s0 + $0x1c] sm:$0xf]
  %v26 = vld [vmem:[%s0 + $0x20] sm:$0xf]
  %v27 = vld [vmem:[%s0 + $0x24] sm:$0xf]
  %v28 = vld [vmem:[%s0 + $0x28] sm:$0xf]
  %v29 = vld [vmem:[%s0 + $0x2c] sm:$0xf]
  %v30 = vld [vmem:[%s0 + $0x30] sm:$0xf]
  %v31 = vld [vmem:[%s0 + $0x34] sm:$0xf]
  %v32 = vld [vmem:[%s0 + $0x38] sm:$0xf]
  %v33 = vld [vmem:[%s0 + $0x3c] sm:$0xf]
  %v34 = vld [vmem:[%s0 + $0x40] sm:$0xf]
  %v35 = vld [vmem:[%s0 + $0x44] sm:$0xf]
  %v36 = vld [vmem:[%s0 + $0x48] sm:$0xf]
  %v37 = vld [vmem:[%s0 + $0x4c] sm:$0xf]
  %v38 = vld [vmem:[%s0 + $0x50] sm:$0xf]
  %v39 = vld [vmem:[%s0 + $0x54] sm:$0xf]
  %v40 = vld [vmem:[%s0 + $0x58] sm:$0xf]
  %v41 = vld [vmem:[%s0 + $0x5c] sm:$0xf]
  %v42 = vld [vmem:[%s0 + $0x60] sm:$0xf]
  %v43 = vld [vmem:[%s0 + $0x64] sm:$0xf]
  %v44 = vld [vmem:[%s0 + $0x68] sm:$0xf]
  %v45 = vld [vmem:[%s0 + $0x6c] sm:$0xf]
  %v46 = vld [vmem:[%s0 + $0x70] sm:$0xf]
  %v47 = vld [vmem:[%s0 + $0x74] sm:$0xf]
  %v48 = vld [vmem:[%s0 + $0x78] sm:$0xf]
  %v49 = vld [vmem:[%s0 + $0x7c] sm:$0xf]
  %v50 = vld [vmem:[%s1] sm:$0xf]
  %v51 = vld [vmem:[%s3] sm:$0xff]
  %v52 = vld [vmem:[%s3 + $0x8] sm:$0xff]
  %v53 = vld [vmem:[%s3 + $0x10] sm:$0xff]
  %v54 = vld [vmem:[%s3 + $0x18] sm:$0xff]
  %v55 = vld [vmem:[%s3 + $0x20] sm:$0xff]
  %v56 = vld [vmem:[%s3 + $0x28] sm:$0xff]
  %v57 = vld [vmem:[%s3 + $0x30] sm:$0xff]
  %v58 = vld [vmem:[%s3 + $0x38] sm:$0xff]
  %v59 = vld [vmem:[%s3 + $0x40] sm:$0xff]
  %v60 = vld [vmem:[%s3 + $0x48] sm:$0xff]
  %v61 = vld [vmem:[%s3 + $0x50] sm:$0xff]
  %v62 = vld [vmem:[%s3 + $0x58] sm:$0xff]
  %v63 = vld [vmem:[%s3 + $0x60] sm:$0xff]
  %v64 = vld [vmem:[%s3 + $0x68] sm:$0xff]
  %v65 = vld [vmem:[%s3 + $0x70] sm:$0xff]
  %v66 = vld [vmem:[%s3 + $0x78] sm:$0xff]
  %v67 = vld [vmem:[%s3 + $0x80] sm:$0xff]
  %v68 = vld [vmem:[%s3 + $0x88] sm:$0xff]
  %v69 = vld [vmem:[%s3 + $0x90] sm:$0xff]
  %v70 = vld [vmem:[%s3 + $0x98] sm:$0xff]
  %v71 = vld [vmem:[%s3 + $0xa0] sm:$0xff]
  %v72 = vld [vmem:[%s3 + $0xa8] sm:$0xff]
  %v73 = vld [vmem:[%s3 + $0xb0] sm:$0xff]
  %v74 = vld [vmem:[%s3 + $0xb8] sm:$0xff]
  %v75 = vld [vmem:[%s3 + $0xc0] sm:$0xff]
  %v76 = vld [vmem:[%s3 + $0xc8] sm:$0xff]
  %v77 = vld [vmem:[%s3 + $0xd0] sm:$0xff]
  %v78 = vld [vmem:[%s3 + $0xd8] sm:$0xff]
  %v79 = vld [vmem:[%s3 + $0xe0] sm:$0xff]
  %v80 = vld [vmem:[%s3 + $0xe8] sm:$0xff]
  %v81 = vld [vmem:[%s3 + $0xf0] sm:$0xff]
  %v82 = vld [vmem:[%s3 + $0xf8] sm:$0xff]
  %v83 = vld [vmem:[%s2] sm:$0x1]
  %v85 = vlaneseq
  %v86 = vshrl.u32 %v85, 7
  %v87 = vsub.s32 0, %v86
  %v88 = vrot.slane %v83, %v87
  %v122 = vunpack.c.l.b16 %v18
  %v123 = vunpack.c.l.b16 %v19
  %v124 = vunpack.c.l.b16 %v20
  %v125 = vunpack.c.l.b16 %v21
  %v126 = vunpack.c.l.b16 %v22
  %v127 = vunpack.c.l.b16 %v23
  %v128 = vunpack.c.l.b16 %v24
  %v129 = vunpack.c.l.b16 %v25
  %v130 = vunpack.c.l.b16 %v26
  %v131 = vunpack.c.l.b16 %v27
  %v132 = vunpack.c.l.b16 %v28
  %v133 = vunpack.c.l.b16 %v29
  %v134 = vunpack.c.l.b16 %v30
  %v135 = vunpack.c.l.b16 %v31
  %v136 = vunpack.c.l.b16 %v32
  %v137 = vunpack.c.l.b16 %v33
  %v138 = vunpack.c.l.b16 %v34
  %v139 = vunpack.c.l.b16 %v35
  %v140 = vunpack.c.l.b16 %v36
  %v141 = vunpack.c.l.b16 %v37
  %v142 = vunpack.c.l.b16 %v38
  %v143 = vunpack.c.l.b16 %v39
  %v144 = vunpack.c.l.b16 %v40
  %v145 = vunpack.c.l.b16 %v41
  %v146 = vunpack.c.l.b16 %v42
  %v147 = vunpack.c.l.b16 %v43
  %v148 = vunpack.c.l.b16 %v44
  %v149 = vunpack.c.l.b16 %v45
  %v150 = vunpack.c.l.b16 %v46
  %v151 = vunpack.c.l.b16 %v47
  %v152 = vunpack.c.l.b16 %v48
  %v153 = vunpack.c.l.b16 %v49
  %v154 = vpack.c.b16 %v123, %v122
  %v155 = vpack.c.b16 %v125, %v124
  %v156 = vpack.c.b16 %v127, %v126
  %v157 = vpack.c.b16 %v129, %v128
  %v158 = vpack.c.b16 %v131, %v130
  %v159 = vpack.c.b16 %v133, %v132
  %v160 = vpack.c.b16 %v135, %v134
  %v161 = vpack.c.b16 %v137, %v136
  %v162 = vpack.c.b16 %v139, %v138
  %v163 = vpack.c.b16 %v141, %v140
  %v164 = vpack.c.b16 %v143, %v142
  %v165 = vpack.c.b16 %v145, %v144
  %v166 = vpack.c.b16 %v147, %v146
  %v167 = vpack.c.b16 %v149, %v148
  %v168 = vpack.c.b16 %v151, %v150
  %v169 = vpack.c.b16 %v153, %v152
  %vm170 = vcmask 64512
  %v172 = vsel %vm170, %v154, 0
  %v175 = vsel %vm170, %v155, 0
  %v178 = vsel %vm170, %v156, 0
  %v181 = vsel %vm170, %v157, 0
  %v184 = vsel %vm170, %v158, 0
  %v187 = vsel %vm170, %v159, 0
  %v190 = vsel %vm170, %v160, 0
  %v193 = vsel %vm170, %v161, 0
  %v196 = vsel %vm170, %v162, 0
  %v199 = vsel %vm170, %v163, 0
  %v202 = vsel %vm170, %v164, 0
  %v205 = vsel %vm170, %v165, 0
  %v208 = vsel %vm170, %v166, 0
  %v211 = vsel %vm170, %v167, 0
  %v214 = vsel %vm170, %v168, 0
  %v217 = vsel %vm170, %v169, 0
  %vm219 = vcmask 1043456
  %v221 = vsel %vm219, %v50, 0
  %223 = vmatprep.subr.bf16.mxu0 0
  %224 = vmatpush1.bf16.msra.mxu0 %v221
  %225 = vmatprep.subr.bf16.mxu0 0
  %226 = vmatpush1.bf16.msra.mxu0 0
  %227 = vmatprep.subr.bf16.mxu0 0
  %228 = vmatpush1.bf16.msra.mxu0 0
  %229 = vmatprep.subr.bf16.mxu0 0
  %230 = vmatpush1.bf16.msra.mxu0 0
  %231 = vmatprep.subr.bf16.mxu0 0
  %232 = vmatpush1.bf16.msra.mxu0 0
  %233 = vmatprep.subr.bf16.mxu0 0
  %234 = vmatpush1.bf16.msra.mxu0 0
  %235 = vmatprep.subr.bf16.mxu0 0
  %236 = vmatpush1.bf16.msra.mxu0 0
  %237 = vmatprep.subr.bf16.mxu0 0
  %238 = vmatpush1.bf16.msra.mxu0 0
  %239 = vmatprep.subr.bf16.mxu0 0
  %240 = vmatpush1.bf16.msra.mxu0 0
  %241 = vmatprep.subr.bf16.mxu0 0
  %242 = vmatpush1.bf16.msra.mxu0 0
  %243 = vmatprep.subr.bf16.mxu0 0
  %244 = vmatpush1.bf16.msra.mxu0 0
  %245 = vmatprep.subr.bf16.mxu0 0
  %246 = vmatpush1.bf16.msra.mxu0 0
  %247 = vmatprep.subr.bf16.mxu0 0
  %248 = vmatpush1.bf16.msra.mxu0 0
  %249 = vmatprep.subr.bf16.mxu0 0
  %250 = vmatpush1.bf16.msra.mxu0 0
  %251 = vmatprep.subr.bf16.mxu0 0
  %252 = vmatpush1.bf16.msra.mxu0 0
  %253 = vmatprep.subr.bf16.mxu0 0
  %254 = vmatpush1.bf16.msra.mxu0 0
  %255 = vmatprep.mubr.bf16.mxu0 0
  %256 = vmatmul.mubr.bf16.gmra.mrb[0].mxu0 %v172
  %v257 = vpop.f32.mrb[0].mxu0
  %v258 = vadd.f32 %v88, %v257
  %v259 = vpop.f32.mrb[0].mxu0
  %v260 = vpop.f32.mrb[0].mxu0
  %v261 = vadd.f32 %v88, %v260
  %v262 = vpop.f32.mrb[0].mxu0
  %263 = vmatprep.mubr.bf16.mxu0 0
  %264 = vmatmul.mubr.bf16.gmra.mrb[0].mxu0 %v175
  %v265 = vpop.f32.mrb[0].mxu0
  %v266 = vadd.f32 %v88, %v265
  %v267 = vpop.f32.mrb[0].mxu0
  %v268 = vpop.f32.mrb[0].mxu0
  %v269 = vadd.f32 %v88, %v268
  %v270 = vpop.f32.mrb[0].mxu0
  %271 = vmatprep.mubr.bf16.mxu0 0
  %272 = vmatmul.mubr.bf16.gmra.mrb[0].mxu0 %v178
  %v273 = vpop.f32.mrb[0].mxu0
  %v274 = vadd.f32 %v88, %v273
  %v275 = vpop.f32.mrb[0].mxu0
  %v276 = vpop.f32.mrb[0].mxu0
  %v277 = vadd.f32 %v88, %v276
  %v278 = vpop.f32.mrb[0].mxu0
  %279 = vmatprep.mubr.bf16.mxu0 0
  %280 = vmatmul.mubr.bf16.gmra.mrb[0].mxu0 %v181
  %v281 = vpop.f32.mrb[0].mxu0
  %v282 = vadd.f32 %v88, %v281
  %v283 = vpop.f32.mrb[0].mxu0
  %v284 = vpop.f32.mrb[0].mxu0
  %v285 = vadd.f32 %v88, %v284
  %v286 = vpop.f32.mrb[0].mxu0
  %287 = vmatprep.mubr.bf16.mxu0 0
  %288 = vmatmul.mubr.bf16.gmra.mrb[0].mxu0 %v184
  %v289 = vpop.f32.mrb[0].mxu0
  %v290 = vadd.f32 %v88, %v289
  %v291 = vpop.f32.mrb[0].mxu0
  %v292 = vpop.f32.mrb[0].mxu0
  %v293 = vadd.f32 %v88, %v292
  %v294 = vpop.f32.mrb[0].mxu0
  %295 = vmatprep.mubr.bf16.mxu0 0
  %296 = vmatmul.mubr.bf16.gmra.mrb[0].mxu0 %v187
  %v297 = vpop.f32.mrb[0].mxu0
  %v298 = vadd.f32 %v88, %v297
  %v299 = vpop.f32.mrb[0].mxu0
  %v300 = vpop.f32.mrb[0].mxu0
  %v301 = vadd.f32 %v88, %v300
  %v302 = vpop.f32.mrb[0].mxu0
  %303 = vmatprep.mubr.bf16.mxu0 0
  %304 = vmatmul.mubr.bf16.gmra.mrb[0].mxu0 %v190
  %v305 = vpop.f32.mrb[0].mxu0
  %v306 = vadd.f32 %v88, %v305
  %v307 = vpop.f32.mrb[0].mxu0
  %v308 = vpop.f32.mrb[0].mxu0
  %v309 = vadd.f32 %v88, %v308
  %v310 = vpop.f32.mrb[0].mxu0
  %311 = vmatprep.mubr.bf16.mxu0 0
  %312 = vmatmul.mubr.bf16.gmra.mrb[0].mxu0 %v193
  %v313 = vpop.f32.mrb[0].mxu0
  %v314 = vadd.f32 %v88, %v313
  %v315 = vpop.f32.mrb[0].mxu0
  %v316 = vpop.f32.mrb[0].mxu0
  %v317 = vadd.f32 %v88, %v316
  %v318 = vpop.f32.mrb[0].mxu0
  %319 = vmatprep.mubr.bf16.mxu0 0
  %320 = vmatmul.mubr.bf16.gmra.mrb[0].mxu0 %v196
  %v321 = vpop.f32.mrb[0].mxu0
  %v322 = vadd.f32 %v88, %v321
  %v323 = vpop.f32.mrb[0].mxu0
  %v324 = vpop.f32.mrb[0].mxu0
  %v325 = vadd.f32 %v88, %v324
  %v326 = vpop.f32.mrb[0].mxu0
  %327 = vmatprep.mubr.bf16.mxu0 0
  %328 = vmatmul.mubr.bf16.gmra.mrb[0].mxu0 %v199
  %v329 = vpop.f32.mrb[0].mxu0
  %v330 = vadd.f32 %v88, %v329
  %v331 = vpop.f32.mrb[0].mxu0
  %v332 = vpop.f32.mrb[0].mxu0
  %v333 = vadd.f32 %v88, %v332
  %v334 = vpop.f32.mrb[0].mxu0
  %335 = vmatprep.mubr.bf16.mxu0 0
  %336 = vmatmul.mubr.bf16.gmra.mrb[0].mxu0 %v202
  %v337 = vpop.f32.mrb[0].mxu0
  %v338 = vadd.f32 %v88, %v337
  %v339 = vpop.f32.mrb[0].mxu0
  %v340 = vpop.f32.mrb[0].mxu0
  %v341 = vadd.f32 %v88, %v340
  %v342 = vpop.f32.mrb[0].mxu0
  %343 = vmatprep.mubr.bf16.mxu0 0
  %344 = vmatmul.mubr.bf16.gmra.mrb[0].mxu0 %v205
  %v345 = vpop.f32.mrb[0].mxu0
  %v346 = vadd.f32 %v88, %v345
  %v347 = vpop.f32.mrb[0].mxu0
  %v348 = vpop.f32.mrb[0].mxu0
  %v349 = vadd.f32 %v88, %v348
  %v350 = vpop.f32.mrb[0].mxu0
  %351 = vmatprep.mubr.bf16.mxu0 0
  %352 = vmatmul.mubr.bf16.gmra.mrb[0].mxu0 %v208
  %v353 = vpop.f32.mrb[0].mxu0
  %v354 = vadd.f32 %v88, %v353
  %v355 = vpop.f32.mrb[0].mxu0
  %v356 = vpop.f32.mrb[0].mxu0
  %v357 = vadd.f32 %v88, %v356
  %v358 = vpop.f32.mrb[0].mxu0
  %359 = vmatprep.mubr.bf16.mxu0 0
  %360 = vmatmul.mubr.bf16.gmra.mrb[0].mxu0 %v211
  %v361 = vpop.f32.mrb[0].mxu0
  %v362 = vadd.f32 %v88, %v361
  %v363 = vpop.f32.mrb[0].mxu0
  %v364 = vpop.f32.mrb[0].mxu0
  %v365 = vadd.f32 %v88, %v364
  %v366 = vpop.f32.mrb[0].mxu0
  %367 = vmatprep.mubr.bf16.mxu0 0
  %368 = vmatmul.mubr.bf16.gmra.mrb[0].mxu0 %v214
  %v369 = vpop.f32.mrb[0].mxu0
  %v370 = vadd.f32 %v88, %v369
  %v371 = vpop.f32.mrb[0].mxu0
  %v372 = vpop.f32.mrb[0].mxu0
  %v373 = vadd.f32 %v88, %v372
  %v374 = vpop.f32.mrb[0].mxu0
  %375 = vmatprep.mubr.bf16.mxu0 0
  %376 = vmatmul.mubr.bf16.gmra.mrb[0].mxu0 %v217
  %v377 = vpop.f32.mrb[0].mxu0
  %v378 = vadd.f32 %v88, %v377
  %v379 = vpop.f32.mrb[0].mxu0
  %v380 = vpop.f32.mrb[0].mxu0
  %v381 = vadd.f32 %v88, %v380
  %v382 = vpop.f32.mrb[0].mxu0
  %383 = vdwg.mxu0
  %v384 = vmax.f32 %v258, 0.0
  %v385 = vmax.f32 %v261, 0.0
  %v386 = vmax.f32 %v266, 0.0
  %v387 = vmax.f32 %v269, 0.0
  %v388 = vmax.f32 %v274, 0.0
  %v389 = vmax.f32 %v277, 0.0
  %v390 = vmax.f32 %v282, 0.0
  %v391 = vmax.f32 %v285, 0.0
  %v392 = vmax.f32 %v290, 0.0
  %v393 = vmax.f32 %v293, 0.0
  %v394 = vmax.f32 %v298, 0.0
  %v395 = vmax.f32 %v301, 0.0
  %v396 = vmax.f32 %v306, 0.0
  %v397 = vmax.f32 %v309, 0.0
  %v398 = vmax.f32 %v314, 0.0
  %v399 = vmax.f32 %v317, 0.0
  %v400 = vmax.f32 %v322, 0.0
  %v401 = vmax.f32 %v325, 0.0
  %v402 = vmax.f32 %v330, 0.0
  %v403 = vmax.f32 %v333, 0.0
  %v404 = vmax.f32 %v338, 0.0
  %v405 = vmax.f32 %v341, 0.0
  %v406 = vmax.f32 %v346, 0.0
  %v407 = vmax.f32 %v349, 0.0
  %v408 = vmax.f32 %v354, 0.0
  %v409 = vmax.f32 %v357, 0.0
  %v410 = vmax.f32 %v362, 0.0
  %v411 = vmax.f32 %v365, 0.0
  %v412 = vmax.f32 %v370, 0.0
  %v413 = vmax.f32 %v373, 0.0
  %v414 = vmax.f32 %v378, 0.0
  %v415 = vmax.f32 %v381, 0.0
  %v416 = vadd.f32 %v51, %v384
  %v417 = vadd.f32 %v52, %v385
  %v418 = vadd.f32 %v53, %v386
  %v419 = vadd.f32 %v54, %v387
  %v420 = vadd.f32 %v55, %v388
  %v421 = vadd.f32 %v56, %v389
  %v422 = vadd.f32 %v57, %v390
  %v423 = vadd.f32 %v58, %v391
  %v424 = vadd.f32 %v59, %v392
  %v425 = vadd.f32 %v60, %v393
  %v426 = vadd.f32 %v61, %v394
  %v427 = vadd.f32 %v62, %v395
  %v428 = vadd.f32 %v63, %v396
  %v429 = vadd.f32 %v64, %v397
  %v430 = vadd.f32 %v65, %v398
  %v431 = vadd.f32 %v66, %v399
  %v432 = vadd.f32 %v67, %v400
  %v433 = vadd.f32 %v68, %v401
  %v434 = vadd.f32 %v69, %v402
  %v435 = vadd.f32 %v70, %v403
  %v436 = vadd.f32 %v71, %v404
  %v437 = vadd.f32 %v72, %v405
  %v438 = vadd.f32 %v73, %v406
  %v439 = vadd.f32 %v74, %v407
  %v440 = vadd.f32 %v75, %v408
  %v441 = vadd.f32 %v76, %v409
  %v442 = vadd.f32 %v77, %v410
  %v443 = vadd.f32 %v78, %v411
  %v444 = vadd.f32 %v79, %v412
  %v445 = vadd.f32 %v80, %v413
  %v446 = vadd.f32 %v81, %v414
  %v447 = vadd.f32 %v82, %v415
  %vm448 = vcmask 261120
  %449 = vst.msk [vmem:[%s4] sm:$0xff] %vm448, %v416
  %450 = vst.msk [vmem:[%s4 + $0x8] sm:$0xff] %vm448, %v417
  %451 = vst.msk [vmem:[%s4 + $0x10] sm:$0xff] %vm448, %v418
  %452 = vst.msk [vmem:[%s4 + $0x18] sm:$0xff] %vm448, %v419
  %453 = vst.msk [vmem:[%s4 + $0x20] sm:$0xff] %vm448, %v420
  %454 = vst.msk [vmem:[%s4 + $0x28] sm:$0xff] %vm448, %v421
  %455 = vst.msk [vmem:[%s4 + $0x30] sm:$0xff] %vm448, %v422
  %456 = vst.msk [vmem:[%s4 + $0x38] sm:$0xff] %vm448, %v423
  %457 = vst.msk [vmem:[%s4 + $0x40] sm:$0xff] %vm448, %v424
  %458 = vst.msk [vmem:[%s4 + $0x48] sm:$0xff] %vm448, %v425
  %459 = vst.msk [vmem:[%s4 + $0x50] sm:$0xff] %vm448, %v426
  %460 = vst.msk [vmem:[%s4 + $0x58] sm:$0xff] %vm448, %v427
  %461 = vst.msk [vmem:[%s4 + $0x60] sm:$0xff] %vm448, %v428
  %462 = vst.msk [vmem:[%s4 + $0x68] sm:$0xff] %vm448, %v429
  %463 = vst.msk [vmem:[%s4 + $0x70] sm:$0xff] %vm448, %v430
  %464 = vst.msk [vmem:[%s4 + $0x78] sm:$0xff] %vm448, %v431
  %465 = vst.msk [vmem:[%s4 + $0x80] sm:$0xff] %vm448, %v432
  %466 = vst.msk [vmem:[%s4 + $0x88] sm:$0xff] %vm448, %v433
  %467 = vst.msk [vmem:[%s4 + $0x90] sm:$0xff] %vm448, %v434
  %468 = vst.msk [vmem:[%s4 + $0x98] sm:$0xff] %vm448, %v435
  %469 = vst.msk [vmem:[%s4 + $0xa0] sm:$0xff] %vm448, %v436
  %470 = vst.msk [vmem:[%s4 + $0xa8] sm:$0xff] %vm448, %v437
  %471 = vst.msk [vmem:[%s4 + $0xb0] sm:$0xff] %vm448, %v438
  %472 = vst.msk [vmem:[%s4 + $0xb8] sm:$0xff] %vm448, %v439
  %473 = vst.msk [vmem:[%s4 + $0xc0] sm:$0xff] %vm448, %v440
  %474 = vst.msk [vmem:[%s4 + $0xc8] sm:$0xff] %vm448, %v441
  %475 = vst.msk [vmem:[%s4 + $0xd0] sm:$0xff] %vm448, %v442
  %476 = vst.msk [vmem:[%s4 + $0xd8] sm:$0xff] %vm448, %v443
  %477 = vst.msk [vmem:[%s4 + $0xe0] sm:$0xff] %vm448, %v444
  %478 = vst.msk [vmem:[%s4 + $0xe8] sm:$0xff] %vm448, %v445
  %479 = vst.msk [vmem:[%s4 + $0xf0] sm:$0xff] %vm448, %v446
  %480 = vst.msk [vmem:[%s4 + $0xf8] sm:$0xff] %vm448, %v447
  // Predicated region
  $region18: #{_lambda_.2} parent=0 // pred_check
    _
  $region19: #{_lambda_.2} parent=0 // pred_check_branch
    %482 = sbr.rel (0) target = $region21
  $region20: #{_lambda_.2} parent=0 // pred_region
    _
  $region21: #{_lambda_.2} parent=0 // pred_fallthru
    _
  // Predicated region
  $region22: #{_lambda_.2} parent=0 // pred_check
    _
  $region23: #{_lambda_.2} parent=0 // pred_check_branch
    %484 = sbr.rel (0) target = $region25
  $region24: #{_lambda_.2} parent=0 // pred_region
    _
  $region25: #{_lambda_.2} parent=0 // pred_fallthru
    _

// kernel: _lambda_.3
$region0: #{_lambda_.3}
  #allocation0 [shape = 'u32[]', space=smem, size = 0x4, offset = 0x4, fixed_abs, tag = 'smem constant byte address 0x4 - core index']
  #allocation1 [shape = 'u32[144,128]{1,0:T(1,128)}', space=vmem, size = 0x12000, scoped, tag = 'internal scratch']
  %s0 = inlined_call_operand.vmem [shape: bf16[16,256], index: 0, kind: input, shape index: {}]
  %s1 = inlined_call_operand.vmem [shape: bf16[256,128], index: 1, kind: input, shape index: {}]
  %s2 = inlined_call_operand.vmem [shape: f32[1,128], index: 2, kind: input, shape index: {}]
  %s3 = inlined_call_operand.vmem [shape: bf16[128,32], index: 3, kind: input, shape index: {}]
  %s4 = inlined_call_operand.vmem [shape: f32[1,32], index: 4, kind: input, shape index: {}]
  %s5 = inlined_call_operand.vmem [shape: f32[16,32], index: 5, kind: output, shape index: {}]
  %s6 = sld [smem:[#allocation0]]
  $region30: #{_lambda_.3} parent=0
    _
  %s8 = ssub.s32 1, %s6
  %s9 = scalar_select 0, %s8, %s6
  // Predicated region
  $region2: #{_lambda_.3} parent=0 // pred_check
    _
  $region3: #{_lambda_.3} parent=0 // pred_check_branch
    %11 = sbr.rel (0) target = $region5
  $region4: #{_lambda_.3} parent=0 // pred_region
    _
  $region5: #{_lambda_.3} parent=0 // pred_fallthru
    _
  // Predicated region
  $region6: #{_lambda_.3} parent=0 // pred_check
    _
  $region7: #{_lambda_.3} parent=0 // pred_check_branch
    %13 = sbr.rel (0) target = $region9
  $region8: #{_lambda_.3} parent=0 // pred_region
    _
  $region9: #{_lambda_.3} parent=0 // pred_fallthru
    _
  // Predicated region
  $region10: #{_lambda_.3} parent=0 // pred_check
    _
  $region11: #{_lambda_.3} parent=0 // pred_check_branch
    %15 = sbr.rel (0) target = $region13
  $region12: #{_lambda_.3} parent=0 // pred_region
    _
  $region13: #{_lambda_.3} parent=0 // pred_fallthru
    _
  // Predicated region
  $region14: #{_lambda_.3} parent=0 // pred_check
    _
  $region15: #{_lambda_.3} parent=0 // pred_check_branch
    %17 = sbr.rel (0) target = $region17
  $region16: #{_lambda_.3} parent=0 // pred_region
    _
  $region17: #{_lambda_.3} parent=0 // pred_fallthru
    _
  // Predicated region
  $region18: #{_lambda_.3} parent=0 // pred_check
    _
  $region19: #{_lambda_.3} parent=0 // pred_check_branch
    %19 = sbr.rel (0) target = $region21
  $region20: #{_lambda_.3} parent=0 // pred_region
    _
  $region21: #{_lambda_.3} parent=0 // pred_fallthru
    _
  %v21 = vld [vmem:[%s0] sm:$0xff]
  %v22 = vld [vmem:[%s0 + $0x8] sm:$0xff]
  %v23 = vld [vmem:[%s1] sm:$0xf]
  %v24 = vld [vmem:[%s1 + $0x4] sm:$0xf]
  %v25 = vld [vmem:[%s1 + $0x8] sm:$0xf]
  %v26 = vld [vmem:[%s1 + $0xc] sm:$0xf]
  %v27 = vld [vmem:[%s1 + $0x10] sm:$0xf]
  %v28 = vld [vmem:[%s1 + $0x14] sm:$0xf]
  %v29 = vld [vmem:[%s1 + $0x18] sm:$0xf]
  %v30 = vld [vmem:[%s1 + $0x1c] sm:$0xf]
  %v31 = vld [vmem:[%s1 + $0x20] sm:$0xf]
  %v32 = vld [vmem:[%s1 + $0x24] sm:$0xf]
  %v33 = vld [vmem:[%s1 + $0x28] sm:$0xf]
  %v34 = vld [vmem:[%s1 + $0x2c] sm:$0xf]
  %v35 = vld [vmem:[%s1 + $0x30] sm:$0xf]
  %v36 = vld [vmem:[%s1 + $0x34] sm:$0xf]
  %v37 = vld [vmem:[%s1 + $0x38] sm:$0xf]
  %v38 = vld [vmem:[%s1 + $0x3c] sm:$0xf]
  %v39 = vld [vmem:[%s1 + $0x40] sm:$0xf]
  %v40 = vld [vmem:[%s1 + $0x44] sm:$0xf]
  %v41 = vld [vmem:[%s1 + $0x48] sm:$0xf]
  %v42 = vld [vmem:[%s1 + $0x4c] sm:$0xf]
  %v43 = vld [vmem:[%s1 + $0x50] sm:$0xf]
  %v44 = vld [vmem:[%s1 + $0x54] sm:$0xf]
  %v45 = vld [vmem:[%s1 + $0x58] sm:$0xf]
  %v46 = vld [vmem:[%s1 + $0x5c] sm:$0xf]
  %v47 = vld [vmem:[%s1 + $0x60] sm:$0xf]
  %v48 = vld [vmem:[%s1 + $0x64] sm:$0xf]
  %v49 = vld [vmem:[%s1 + $0x68] sm:$0xf]
  %v50 = vld [vmem:[%s1 + $0x6c] sm:$0xf]
  %v51 = vld [vmem:[%s1 + $0x70] sm:$0xf]
  %v52 = vld [vmem:[%s1 + $0x74] sm:$0xf]
  %v53 = vld [vmem:[%s1 + $0x78] sm:$0xf]
  %v54 = vld [vmem:[%s1 + $0x7c] sm:$0xf]
  %v55 = vld [vmem:[%s2] sm:$0x1]
  %v57 = vlaneseq
  %v58 = vshrl.u32 %v57, 7
  %v59 = vsub.s32 0, %v58
  %v60 = vrot.slane %v55, %v59
  %v64 = vunpack.c.l.b16 %v21
  %v65 = vunpack.c.h.b16 %v21
  %v66 = vunpack.c.l.b16 %v22
  %v67 = vunpack.c.h.b16 %v22
  %v68 = vpack.c.b16 %v66, %v64
  %v69 = vpack.c.b16 %v67, %v65
  %v104 = vunpack.c.l.b16 %v23
  %v105 = vunpack.c.l.b16 %v24
  %v106 = vunpack.c.l.b16 %v25
  %v107 = vunpack.c.l.b16 %v26
  %v108 = vunpack.c.l.b16 %v27
  %v109 = vunpack.c.l.b16 %v28
  %v110 = vunpack.c.l.b16 %v29
  %v111 = vunpack.c.l.b16 %v30
  %v112 = vunpack.c.l.b16 %v31
  %v113 = vunpack.c.l.b16 %v32
  %v114 = vunpack.c.l.b16 %v33
  %v115 = vunpack.c.l.b16 %v34
  %v116 = vunpack.c.l.b16 %v35
  %v117 = vunpack.c.l.b16 %v36
  %v118 = vunpack.c.l.b16 %v37
  %v119 = vunpack.c.l.b16 %v38
  %v120 = vunpack.c.l.b16 %v39
  %v121 = vunpack.c.l.b16 %v40
  %v122 = vunpack.c.l.b16 %v41
  %v123 = vunpack.c.l.b16 %v42
  %v124 = vunpack.c.l.b16 %v43
  %v125 = vunpack.c.l.b16 %v44
  %v126 = vunpack.c.l.b16 %v45
  %v127 = vunpack.c.l.b16 %v46
  %v128 = vunpack.c.l.b16 %v47
  %v129 = vunpack.c.l.b16 %v48
  %v130 = vunpack.c.l.b16 %v49
  %v131 = vunpack.c.l.b16 %v50
  %v132 = vunpack.c.l.b16 %v51
  %v133 = vunpack.c.l.b16 %v52
  %v134 = vunpack.c.l.b16 %v53
  %v135 = vunpack.c.l.b16 %v54
  %v136 = vpack.c.b16 %v105, %v104
  %v137 = vpack.c.b16 %v107, %v106
  %v138 = vpack.c.b16 %v109, %v108
  %v139 = vpack.c.b16 %v111, %v110
  %v140 = vpack.c.b16 %v113, %v112
  %v141 = vpack.c.b16 %v115, %v114
  %v142 = vpack.c.b16 %v117, %v116
  %v143 = vpack.c.b16 %v119, %v118
  %v144 = vpack.c.b16 %v121, %v120
  %v145 = vpack.c.b16 %v123, %v122
  %v146 = vpack.c.b16 %v125, %v124
  %v147 = vpack.c.b16 %v127, %v126
  %v148 = vpack.c.b16 %v129, %v128
  %v149 = vpack.c.b16 %v131, %v130
  %v150 = vpack.c.b16 %v133, %v132
  %v151 = vpack.c.b16 %v135, %v134
  %168 = vmatprep.subr.bf16.mxu0 0
  %169 = vmatpush1.bf16.msra.mxu0 %v136
  %170 = vmatprep.subr.bf16.mxu0 0
  %171 = vmatpush1.bf16.msra.mxu0 %v137
  %172 = vmatprep.subr.bf16.mxu0 0
  %173 = vmatpush1.bf16.msra.mxu0 %v138
  %174 = vmatprep.subr.bf16.mxu0 0
  %175 = vmatpush1.bf16.msra.mxu0 %v139
  %176 = vmatprep.subr.bf16.mxu0 0
  %177 = vmatpush1.bf16.msra.mxu0 %v140
  %178 = vmatprep.subr.bf16.mxu0 0
  %179 = vmatpush1.bf16.msra.mxu0 %v141
  %180 = vmatprep.subr.bf16.mxu0 0
  %181 = vmatpush1.bf16.msra.mxu0 %v142
  %182 = vmatprep.subr.bf16.mxu0 0
  %183 = vmatpush1.bf16.msra.mxu0 %v143
  %184 = vmatprep.subr.bf16.mxu0 0
  %185 = vmatpush1.bf16.msra.mxu0 %v144
  %186 = vmatprep.subr.bf16.mxu0 0
  %187 = vmatpush1.bf16.msra.mxu0 %v145
  %188 = vmatprep.subr.bf16.mxu0 0
  %189 = vmatpush1.bf16.msra.mxu0 %v146
  %190 = vmatprep.subr.bf16.mxu0 0
  %191 = vmatpush1.bf16.msra.mxu0 %v147
  %192 = vmatprep.subr.bf16.mxu0 0
  %193 = vmatpush1.bf16.msra.mxu0 %v148
  %194 = vmatprep.subr.bf16.mxu0 0
  %195 = vmatpush1.bf16.msra.mxu0 %v149
  %196 = vmatprep.subr.bf16.mxu0 0
  %197 = vmatpush1.bf16.msra.mxu0 %v150
  %198 = vmatprep.subr.bf16.mxu0 0
  %199 = vmatpush1.bf16.msra.mxu0 %v151
  %200 = vmatprep.mubr.bf16.mxu0 %v69
  %201 = vmatmul.mubr.bf16.gmra.mrb[0].mxu0 %v68
  %v202 = vpop.f32.mrb[0].mxu0
  %v203 = vadd.f32 %v60, %v202
  %v204 = vpop.f32.mrb[0].mxu0
  %v205 = vpop.f32.mrb[0].mxu0
  %v206 = vadd.f32 %v60, %v205
  %v207 = vpop.f32.mrb[0].mxu0
  %208 = vdwg.mxu0
  %v209 = vmax.f32 %v203, 0.0
  %v210 = vmax.f32 %v206, 0.0
  %v211 = vpack.c.bf16 %v210, %v209
  %v212 = vld [vmem:[%s3] sm:$0xf]
  %v213 = vld [vmem:[%s3 + $0x4] sm:$0xf]
  %v214 = vld [vmem:[%s3 + $0x8] sm:$0xf]
  %v215 = vld [vmem:[%s3 + $0xc] sm:$0xf]
  %v216 = vld [vmem:[%s3 + $0x10] sm:$0xf]
  %v217 = vld [vmem:[%s3 + $0x14] sm:$0xf]
  %v218 = vld [vmem:[%s3 + $0x18] sm:$0xf]
  %v219 = vld [vmem:[%s3 + $0x1c] sm:$0xf]
  %v220 = vld [vmem:[%s3 + $0x20] sm:$0xf]
  %v221 = vld [vmem:[%s3 + $0x24] sm:$0xf]
  %v222 = vld [vmem:[%s3 + $0x28] sm:$0xf]
  %v223 = vld [vmem:[%s3 + $0x2c] sm:$0xf]
  %v224 = vld [vmem:[%s3 + $0x30] sm:$0xf]
  %v225 = vld [vmem:[%s3 + $0x34] sm:$0xf]
  %v226 = vld [vmem:[%s3 + $0x38] sm:$0xf]
  %v227 = vld [vmem:[%s3 + $0x3c] sm:$0xf]
  %v228 = vld [vmem:[%s4] sm:$0x1]
  %v230 = vlaneseq
  %v231 = vshrl.u32 %v230, 7
  %v232 = vsub.s32 0, %v231
  %v233 = vrot.slane %v228, %v232
  %v251 = vunpack.c.l.b16 %v212
  %v252 = vunpack.c.l.b16 %v213
  %v253 = vunpack.c.l.b16 %v214
  %v254 = vunpack.c.l.b16 %v215
  %v255 = vunpack.c.l.b16 %v216
  %v256 = vunpack.c.l.b16 %v217
  %v257 = vunpack.c.l.b16 %v218
  %v258 = vunpack.c.l.b16 %v219
  %v259 = vunpack.c.l.b16 %v220
  %v260 = vunpack.c.l.b16 %v221
  %v261 = vunpack.c.l.b16 %v222
  %v262 = vunpack.c.l.b16 %v223
  %v263 = vunpack.c.l.b16 %v224
  %v264 = vunpack.c.l.b16 %v225
  %v265 = vunpack.c.l.b16 %v226
  %v266 = vunpack.c.l.b16 %v227
  %v267 = vpack.c.b16 %v252, %v251
  %v268 = vpack.c.b16 %v254, %v253
  %v269 = vpack.c.b16 %v256, %v255
  %v270 = vpack.c.b16 %v258, %v257
  %v271 = vpack.c.b16 %v260, %v259
  %v272 = vpack.c.b16 %v262, %v261
  %v273 = vpack.c.b16 %v264, %v263
  %v274 = vpack.c.b16 %v266, %v265
  %283 = vmatprep.subr.bf16.mxu0 0
  %284 = vmatpush1.bf16.msra.mxu0 %v267
  %285 = vmatprep.subr.bf16.mxu0 0
  %286 = vmatpush1.bf16.msra.mxu0 %v268
  %287 = vmatprep.subr.bf16.mxu0 0
  %288 = vmatpush1.bf16.msra.mxu0 %v269
  %289 = vmatprep.subr.bf16.mxu0 0
  %290 = vmatpush1.bf16.msra.mxu0 %v270
  %291 = vmatprep.subr.bf16.mxu0 0
  %292 = vmatpush1.bf16.msra.mxu0 %v271
  %293 = vmatprep.subr.bf16.mxu0 0
  %294 = vmatpush1.bf16.msra.mxu0 %v272
  %295 = vmatprep.subr.bf16.mxu0 0
  %296 = vmatpush1.bf16.msra.mxu0 %v273
  %297 = vmatprep.subr.bf16.mxu0 0
  %298 = vmatpush1.bf16.msra.mxu0 %v274
  %299 = vmatprep.subr.bf16.mxu0 0
  %300 = vmatpush1.bf16.msra.mxu0 0
  %301 = vmatprep.subr.bf16.mxu0 0
  %302 = vmatpush1.bf16.msra.mxu0 0
  %303 = vmatprep.subr.bf16.mxu0 0
  %304 = vmatpush1.bf16.msra.mxu0 0
  %305 = vmatprep.subr.bf16.mxu0 0
  %306 = vmatpush1.bf16.msra.mxu0 0
  %307 = vmatprep.subr.bf16.mxu0 0
  %308 = vmatpush1.bf16.msra.mxu0 0
  %309 = vmatprep.subr.bf16.mxu0 0
  %310 = vmatpush1.bf16.msra.mxu0 0
  %311 = vmatprep.subr.bf16.mxu0 0
  %312 = vmatpush1.bf16.msra.mxu0 0
  %313 = vmatprep.subr.bf16.mxu0 0
  %314 = vmatpush1.bf16.msra.mxu0 0
  %315 = vmatprep.mubr.bf16.mxu0 0
  %316 = vmatmul.mubr.bf16.gmra.mrb[0].mxu0 %v211
  %v317 = vpop.f32.mrb[0].mxu0
  %v318 = vadd.f32 %v233, %v317
  %v319 = vpop.f32.mrb[0].mxu0
  %v320 = vpop.f32.mrb[0].mxu0
  %v321 = vadd.f32 %v233, %v320
  %v322 = vpop.f32.mrb[0].mxu0
  %323 = vdwg.mxu0
  %v324 = vmax.f32 %v318, 0.0
  %v325 = vmax.f32 %v321, 0.0
  %vm326 = vcmask 261120
  %327 = vst.msk [vmem:[%s5] sm:$0xff] %vm326, %v324
  %328 = vst.msk [vmem:[%s5 + $0x8] sm:$0xff] %vm326, %v325
  // Predicated region
  $region22: #{_lambda_.3} parent=0 // pred_check
    _
  $region23: #{_lambda_.3} parent=0 // pred_check_branch
    %330 = sbr.rel (0) target = $region25
  $region24: #{_lambda_.3} parent=0 // pred_region
    _
  $region25: #{_lambda_.3} parent=0 // pred_fallthru
    _
  // Predicated region
  $region26: #{_lambda_.3} parent=0 // pred_check
    _
  $region27: #{_lambda_.3} parent=0 // pred_check_branch
    %332 = sbr.rel (0) target = $region29
  $region28: #{_lambda_.3} parent=0 // pred_region
    _
  $region29: #{_lambda_.3} parent=0 // pred_fallthru
    _

</llo_original>
